<compile_context>
chip_gen: v7x
topology: tpu7x:2x2x1
jax: 0.10.0
libtpu: 0.0.40
codegen_flags: <defaults>
</compile_context>

<pallas_src>
import jax
import jax.numpy as jnp
import numpy as np
from jax import lax
from jax.experimental import pallas as pl
from jax.experimental.pallas import tpu as pltpu


_COMPUTE_DTYPE = jnp.bfloat16


# ---------------------------------------------------------------------------
# Kernel 1: single-invocation path (everything resident in VMEM, no grid).
#   probs = sigmoid(x @ w_eff^T + b_eff)     x:(B,D) f32   w_eff:(K,D) bf16
# ---------------------------------------------------------------------------
def _kfold_small_kernel(x_ref, w_ref, b_ref, o_ref):
    x = x_ref[...].astype(w_ref.dtype)          # in-kernel cast (single HBM read of x)
    logits = lax.dot_general(
        x, w_ref[...],
        dimension_numbers=(((1,), (1,)), ((), ())),     # contract last dims (trans_b)
        preferred_element_type=jnp.float32)
    o_ref[...] = jax.nn.sigmoid(logits + b_ref[...]).astype(o_ref.dtype)


# ---------------------------------------------------------------------------
# Kernel 2: tiled-reduction fallback for a large-D head.
#   Grid axis 0 tiles D ("arbitrary" reduction axis).  The bias initializes the
#   resident f32 output block, which doubles as the accumulator; the epilogue is
#   an in-place sigmoid.  No scratch.
# ---------------------------------------------------------------------------
def _kfold_tiled_kernel(x_ref, w_ref, b_ref, o_ref):
    k = pl.program_id(0)

    @pl.when(k == 0)
    def _():
        o_ref[...] = jnp.broadcast_to(b_ref[...], o_ref.shape)

    x = x_ref[...].astype(w_ref.dtype)          # in-kernel cast, hidden under DMA
    o_ref[...] += lax.dot_general(
        x, w_ref[...],
        dimension_numbers=(((1,), (1,)), ((), ())),
        preferred_element_type=jnp.float32)

    @pl.when(k == pl.num_programs(0) - 1)
    def _():
        o_ref[...] = jax.nn.sigmoid(o_ref[...])


# ---------------------------------------------------------------------------
# One-time parameter preparation (hoisted out of the per-call path).
# ---------------------------------------------------------------------------
def prepare_kfold_params(mean, std, w, b, *, compute_dtype=_COMPUTE_DTYPE):
    """mean/std: (Cin,) per-channel stats; w: (K, D, C); b: (K, C),
    with D = Cin*H*W (row-major NCHW flattening: feature = c*H*W + h*W + w).

    Normalization and the class-0 slice are folded into the parameters:
      w_eff = w0 / std           (lane-major, shape (K, D), compute_dtype)
      b_eff = b0 - (mean/std)@w0 (shape (1, K), float32)
    so the kernel is a pure matmul + sigmoid.
    """
    K, D, C = w.shape
    Cin = mean.shape[0]
    hw = D // Cin

    mean_f = jnp.repeat(mean.astype(jnp.float32), hw)            # (D,)
    inv_std = 1.0 / jnp.repeat(std.astype(jnp.float32), hw)      # (D,)

    w0 = w[:, :, 0].astype(jnp.float32)                          # (K, D)  class-0 only
    b0 = b[:, 0].astype(jnp.float32)                             # (K,)

    w_eff = w0 * inv_std[None, :]                                # (K, D), lane-major D
    b_eff = (b0 - w0 @ (mean_f * inv_std)).reshape(1, K)         # (1, K), kept f32

    return w_eff.astype(compute_dtype), b_eff


# ---------------------------------------------------------------------------
# Forward wrapper.
# ---------------------------------------------------------------------------
def kfold_ensemble_forward(x, w_eff, b_eff, *, max_single_shot_d=131072, tk=16384):
    """x: (B, Cin, H, W) NCHW raw pixels (f32); w_eff/b_eff from prepare_kfold_params.

    Returns (B, K) float32 fold probabilities.
    """
    B = x.shape[0]
    K, D = w_eff.shape
    x_flat = x.reshape(B, D)                    # stays f32; cast happens in-kernel

    if D <= max_single_shot_d:
        # Gridless path: whole operands in VMEM, one kernel step, no accumulator.
        return pl.pallas_call(
            _kfold_small_kernel,
            out_shape=jax.ShapeDtypeStruct((B, K), jnp.float32),
        )(x_flat, w_eff, b_eff)

    # ----- tiled-reduction fallback for very large D -----
    assert tk % 128 == 0, "reduction tile must be lane-aligned (multiple of 128)"
    n_tiles = pl.cdiv(D, tk)
    d_pad = n_tiles * tk
    if d_pad != D:
        # Zero-pad the ragged tail: padded features contribute nothing to the dot.
        x_flat = jnp.pad(x_flat, ((0, 0), (0, d_pad - D)))
        w_eff = jnp.pad(w_eff, ((0, 0), (0, d_pad - D)))

    # VMEM budget: double-buffered lane-dense tiles (sublane-padded estimates).
    b_pad = ((B + 7) // 8) * 8
    k_pad = ((K + 15) // 16) * 16
    x_tile_bytes = b_pad * tk * 4               # f32 x tile
    w_tile_bytes = k_pad * tk * 2               # bf16 weight tile
    vmem_bytes = 4 * (x_tile_bytes + w_tile_bytes) + (2 << 20)   # 2 bufs + headroom
    vmem_bytes = int(min(max(vmem_bytes, 16 << 20), 32 << 20))   # safe on v5e..v7x

    return pl.pallas_call(
        _kfold_tiled_kernel,
        out_shape=jax.ShapeDtypeStruct((B, K), jnp.float32),
        grid_spec=pltpu.PrefetchScalarGridSpec(
            num_scalar_prefetch=0,
            grid=(n_tiles,),
            in_specs=[
                pl.BlockSpec((B, tk), lambda k: (0, k)),     # x tile (lane-dense)
                pl.BlockSpec((K, tk), lambda k: (0, k)),     # weight tile (lane-dense)
                pl.BlockSpec((1, K), lambda k: (0, 0)),      # bias (resident)
            ],
            out_specs=pl.BlockSpec((B, K), lambda k: (0, 0)),  # resident accumulator
        ),
        compiler_params=pltpu.CompilerParams(
            dimension_semantics=("arbitrary",),              # reduction axis
            vmem_limit_bytes=vmem_bytes,
        ),
    )(x_flat, w_eff, b_eff)


# ---------------------------------------------------------------------------
# Pure-JAX reference (f32, unfused), matching the PyTorch module semantics.
# ---------------------------------------------------------------------------
def _reference(x, mean, std, w, b):
    B = x.shape[0]
    K, D, C = w.shape
    xn = (x - mean.reshape(1, -1, 1, 1)) / std.reshape(1, -1, 1, 1)
    xf = xn.reshape(B, D)
    probs = []
    for k in range(K):
        logits = xf @ w[k] + b[k]
        probs.append(jax.nn.sigmoid(logits)[:, 0])
    return jnp.stack(probs, axis=1)


if __name__ == "__main__":
    # Small shapes: batch=2, in_chans=3, spatial=16x16, num_classes=8, 3 folds.
    B, Cin, H, W = 2, 3, 16, 16
    K, C = 3, 8
    D = Cin * H * W

    key = jax.random.PRNGKey(0)
    kx, kw, kb = jax.random.split(key, 3)

    # Raw pixel inputs in [0, 255] (the module normalizes with *255 stats).
    x = jax.random.uniform(kx, (B, Cin, H, W), dtype=jnp.float32) * 255.0

    # Deterministic normalization buffers (ImageNet stats * 255, as in the module).
    mean = jnp.array([0.485, 0.456, 0.406], dtype=jnp.float32) * 255.0
    std = jnp.array([0.229, 0.224, 0.225], dtype=jnp.float32) * 255.0

    # Deterministic synthetic per-fold classifier parameters.
    w = jax.random.normal(kw, (K, D, C), dtype=jnp.float32) * 0.02
    b = jax.random.normal(kb, (K, C), dtype=jnp.float32) * 0.1

    # One-time parameter prep (normalization + class-0 slice folded, (K, D) layout).
    w_eff, b_eff = prepare_kfold_params(mean, std, w, b)

    ref = jax.block_until_ready(_reference(x, mean, std, w, b))

    # Primary (gridless, single-step) path.
    probs = jax.block_until_ready(kfold_ensemble_forward(x, w_eff, b_eff))
    np.testing.assert_allclose(np.asarray(probs), np.asarray(ref), rtol=2e-2, atol=2e-2)
    assert probs.shape == (B, K)

    # Also exercise the tiled-reduction fallback (forced; tk=512 hits the
    # ragged-tail zero-padding path since D=768 is not a multiple of 512).
    probs_tiled = jax.block_until_ready(
        kfold_ensemble_forward(x, w_eff, b_eff, max_single_shot_d=0, tk=512))
    np.testing.assert_allclose(np.asarray(probs_tiled), np.asarray(ref),
                               rtol=2e-2, atol=2e-2)

    print("KERNEL_OK")
</pallas_src>

<mosaic_0001>
module attributes {stable_mosaic.version = 11 : i64} {
  func.func @_kfold_small_kernel(%arg0: memref<2x768xf32, #tpu.memory_space<vmem>>, %arg1: memref<3x768xbf16, #tpu.memory_space<vmem>>, %arg2: memref<1x3xf32, #tpu.memory_space<vmem>>, %arg3: memref<2x3xf32, #tpu.memory_space<vmem>>) attributes {dimension_semantics = [], scalar_prefetch = 0 : i64, scratch_operands = 0 : i64, tpu.core_type = #tpu.core_type<tc>} {
    %c0 = arith.constant 0 : index
    %c0_0 = arith.constant 0 : index
    %0 = vector.load %arg0[%c0, %c0_0] : memref<2x768xf32, #tpu.memory_space<vmem>>, vector<2x768xf32>
    %1 = arith.truncf %0 : vector<2x768xf32> to vector<2x768xbf16>
    %c0_1 = arith.constant 0 : index
    %c0_2 = arith.constant 0 : index
    %2 = vector.load %arg1[%c0_1, %c0_2] : memref<3x768xbf16, #tpu.memory_space<vmem>>, vector<3x768xbf16>
    %cst = arith.constant dense<0.000000e+00> : vector<2x3xf32>
    %3 = tpu.matmul %1, %2, %cst {dimension_numbers = #tpu.dot_dimension_numbers<[1], [1], [0], [0], [0, 0, 1, 0], [], []>} : vector<2x768xbf16>, vector<3x768xbf16>, vector<2x3xf32> -> vector<2x3xf32>
    %c0_3 = arith.constant 0 : index
    %c0_4 = arith.constant 0 : index
    %4 = vector.load %arg2[%c0_3, %c0_4] : memref<1x3xf32, #tpu.memory_space<vmem>>, vector<1x3xf32>
    %5 = vector.broadcast %4 : vector<1x3xf32> to vector<2x3xf32>
    %6 = arith.addf %3, %5 : vector<2x3xf32>
    %7 = arith.negf %6 : vector<2x3xf32>
    %8 = math.exp %7 : vector<2x3xf32>
    %cst_5 = arith.constant 1.000000e+00 : f32
    %9 = vector.broadcast %cst_5 : f32 to vector<2x3xf32>
    %10 = arith.addf %9, %8 : vector<2x3xf32>
    %11 = arith.divf %9, %10 : vector<2x3xf32>
    %c0_6 = arith.constant 0 : index
    %c0_7 = arith.constant 0 : index
    %12 = vector.load %arg3[%c0_6, %c0_7] : memref<2x3xf32, #tpu.memory_space<vmem>>, vector<2x3xf32>
    tpu.vector_store %arg3[%c0_6, %c0_7], %11 {strides = array<i32>} : memref<2x3xf32, #tpu.memory_space<vmem>>, vector<2x3xf32>,
    return
  }
}

</mosaic_0001>

<llo_original>
// kernel: tpu_custom_call.1
$region0: #{tpu_custom_call.1}
  #allocation0 [shape = 'u32[]', space=smem, size = 0x4, offset = 0x4, fixed_abs, tag = 'smem constant byte address 0x4 - core index']
  #allocation1 [shape = 'u32[144,128]{1,0:T(1,128)}', space=vmem, size = 0x12000, scoped, tag = 'internal scratch']
  %s0 = inlined_call_operand.hbm [shape: f32[2,768], index: 0, kind: input, shape index: {}]
  %s1 = inlined_call_operand.hbm [shape: bf16[3,768], index: 1, kind: input, shape index: {}]
  %s2 = inlined_call_operand.vmem [shape: f32[1,3], index: 2, kind: input, shape index: {}]
  %s3 = inlined_call_operand.hbm [shape: f32[2,3], index: 3, kind: output, shape index: {}]
  %s4 = sld [smem:[#allocation0]]
  $region30: #{tpu_custom_call.1} parent=0
    _
  %s6 = ssub.s32 1, %s4
  %s7 = scalar_select 0, %s6, %s4
  $region1: #{tpu_custom_call.1} parent=0
    #allocation2 [shape = 'u8[6144]{0}', space=vmem, size = 0x1800, scoped, tag = 'input window, operand 0, single buffered']
    #allocation3 [shape = 's32[1]{0}', space=sflag, size = 0x4, scoped, tag = 'scoped memory for tpu_custom_call.1']
    #allocation4 [shape = 's32[1]{0}', space=sflag, size = 0x4, scoped, tag = 'scoped memory for tpu_custom_call.1']
    #allocation5 [shape = 'u8[6144]{0}', space=vmem, size = 0x1800, scoped, tag = 'input window, operand 1, single buffered']
    #allocation6 [shape = 's32[1]{0}', space=sflag, size = 0x4, scoped, tag = 'scoped memory for tpu_custom_call.1']
    #allocation7 [shape = 'u8[1024]{0}', space=vmem, size = 0x400, scoped, tag = 'output window, operand 0, single buffered']
    %8 = vsyncpa [#allocation3], 0
    %9 = vsyncpa [#allocation6], 0
    %10 = vsyncpa [#allocation4], 0
    // Predicated region
    $region2: #{tpu_custom_call.1} parent=1 // pred_check
      _
    $region3: #{tpu_custom_call.1} parent=1 // pred_check_branch
      %12 = sbr.rel (0) target = $region5
    $region4: #{tpu_custom_call.1} parent=1 // pred_region
      %s14 = ssub.s32 192, 192
      %15 = vsyncadd [#allocation3], %s14
      %s17 = sshll.u32 [#allocation2], 4
      %s18 = int_to_ptr.vmem [resolvable:$true] %s17
      %20 = dma.hbm_to_vmem [thread:$0]  %s0, 192, %s18, [#allocation3]
    $region5: #{tpu_custom_call.1} parent=1 // pred_fallthru
      _
    // Predicated region
    $region6: #{tpu_custom_call.1} parent=1 // pred_check
      _
    $region7: #{tpu_custom_call.1} parent=1 // pred_check_branch
      %22 = sbr.rel (0) target = $region9
    $region8: #{tpu_custom_call.1} parent=1 // pred_region
      %s24 = ssub.s32 192, 192
      %25 = vsyncadd [#allocation6], %s24
      %s27 = sshll.u32 [#allocation5], 4
      %s28 = int_to_ptr.vmem [resolvable:$true] %s27
      %30 = dma.hbm_to_vmem [thread:$0]  %s1, 192, %s28, [#allocation6]
    $region9: #{tpu_custom_call.1} parent=1 // pred_fallthru
      _
    // Predicated region
    $region10: #{tpu_custom_call.1} parent=1 // pred_check
      _
    $region11: #{tpu_custom_call.1} parent=1 // pred_check_branch
      %32 = sbr.rel (0) target = $region13
    $region12: #{tpu_custom_call.1} parent=1 // pred_region
      _
    $region13: #{tpu_custom_call.1} parent=1 // pred_fallthru
      _
    // Predicated region
    $region14: #{tpu_custom_call.1} parent=1 // pred_check
      _
    $region15: #{tpu_custom_call.1} parent=1 // pred_check_branch
      %34 = sbr.rel (0) target = $region17
    $region16: #{tpu_custom_call.1} parent=1 // pred_region
      %35 = dma.done [#allocation3], 192
    $region17: #{tpu_custom_call.1} parent=1 // pred_fallthru
      _
    // Predicated region
    $region18: #{tpu_custom_call.1} parent=1 // pred_check
      _
    $region19: #{tpu_custom_call.1} parent=1 // pred_check_branch
      %37 = sbr.rel (0) target = $region21
    $region20: #{tpu_custom_call.1} parent=1 // pred_region
      %38 = dma.done [#allocation6], 192
    $region21: #{tpu_custom_call.1} parent=1 // pred_fallthru
      _
    %v40 = vld [vmem:[#allocation2] sm:$0xff]
    %v41 = vld [vmem:[#allocation2 + $0x8] sm:$0xf]
    %v44 = vcombine.high %v40, %v40
    %v46 = vunpack.c.l.s4 1983009808
    %v47 = vunpack.c.0.s8 %v46
    %v48 = vlaneseq
    %v49 = vshrl.u32 %v48, 7
    %v50 = vsub.s32 %v47, %v49
    %v51 = vrot.slane %v40, %v50
    %v53 = vunpack.c.l.s4 1983009808
    %v54 = vunpack.c.0.s8 %v53
    %v55 = vlaneseq
    %v56 = vshrl.u32 %v55, 7
    %v57 = vsub.s32 %v54, %v56
    %v58 = vrot.slane %v44, %v57
    %v59 = vcombine.high %v51, %v51
    %v60 = vcombine.high %v58, %v58
    %v62 = vunpack.c.l.s4 1983009808
    %v63 = vunpack.c.0.s8 %v62
    %v64 = vlaneseq
    %v65 = vshrl.u32 %v64, 7
    %v66 = vsub.s32 %v63, %v65
    %v67 = vrot.slane %v41, %v66
    %v68 = vcombine.high %v67, %v67
    %v75 = vpack.c.bf16 %v51, %v51
    %v76 = vpack.c.bf16 %v59, %v59
    %v77 = vpack.c.bf16 %v58, %v58
    %v78 = vpack.c.bf16 %v60, %v60
    %v79 = vpack.c.bf16 %v67, %v67
    %v80 = vpack.c.bf16 %v68, %v68
    %v81 = vld [vmem:[#allocation5] sm:$0xff]
    %v82 = vld [vmem:[#allocation5 + $0x8] sm:$0xf]
    %v83 = vld [vmem:[%s2] sm:$0x1]
    %v85 = vlaneseq
    %v86 = vshrl.u32 %v85, 7
    %v87 = vsub.s32 0, %v86
    %v88 = vrot.slane %v83, %v87
    %v92 = vcombine.high %v81, %v81
    %v94 = vunpack.c.l.s4 1983009808
    %v95 = vunpack.c.0.s8 %v94
    %v96 = vlaneseq
    %v97 = vshrl.u32 %v96, 7
    %v98 = vsub.s32 %v95, %v97
    %v99 = vrot.slane %v81, %v98
    %v101 = vunpack.c.l.s4 1983009808
    %v102 = vunpack.c.0.s8 %v101
    %v103 = vlaneseq
    %v104 = vshrl.u32 %v103, 7
    %v105 = vsub.s32 %v102, %v104
    %v106 = vrot.slane %v92, %v105
    %v107 = vcombine.high %v99, %v99
    %v108 = vcombine.high %v106, %v106
    %v110 = vunpack.c.l.s4 1983009808
    %v111 = vunpack.c.0.s8 %v110
    %v112 = vlaneseq
    %v113 = vshrl.u32 %v112, 7
    %v114 = vsub.s32 %v111, %v113
    %v115 = vrot.slane %v82, %v114
    %v116 = vcombine.high %v115, %v115
    %123 = vmatprep.subr.bf16.mxu0 %v107
    %124 = vmatpush1.bf16.xpose.msra.mxu0 %v99
    %125 = vmatprep.subr.bf16.mxu0 0
    %126 = vmatpush1.bf16.xpose.msra.mxu0 0
    %127 = vmatprep.subr.bf16.mxu0 0
    %128 = vmatpush1.bf16.xpose.msra.mxu0 0
    %129 = vmatprep.subr.bf16.mxu0 0
    %130 = vmatpush1.bf16.xpose.msra.mxu0 0
    %131 = vmatprep.subr.bf16.mxu0 0
    %132 = vmatpush1.bf16.xpose.msra.mxu0 0
    %133 = vmatprep.subr.bf16.mxu0 0
    %134 = vmatpush1.bf16.xpose.msra.mxu0 0
    %135 = vmatprep.subr.bf16.mxu0 0
    %136 = vmatpush1.bf16.xpose.msra.mxu0 0
    %137 = vmatprep.subr.bf16.mxu0 0
    %138 = vmatpush1.bf16.xpose.msra.mxu0 0
    %139 = vmatprep.subr.bf16.mxu0 0
    %140 = vmatpush1.bf16.xpose.msra.mxu0 0
    %141 = vmatprep.subr.bf16.mxu0 0
    %142 = vmatpush1.bf16.xpose.msra.mxu0 0
    %143 = vmatprep.subr.bf16.mxu0 0
    %144 = vmatpush1.bf16.xpose.msra.mxu0 0
    %145 = vmatprep.subr.bf16.mxu0 0
    %146 = vmatpush1.bf16.xpose.msra.mxu0 0
    %147 = vmatprep.subr.bf16.mxu0 0
    %148 = vmatpush1.bf16.xpose.msra.mxu0 0
    %149 = vmatprep.subr.bf16.mxu0 0
    %150 = vmatpush1.bf16.xpose.msra.mxu0 0
    %151 = vmatprep.subr.bf16.mxu0 0
    %152 = vmatpush1.bf16.xpose.msra.mxu0 0
    %153 = vmatprep.subr.bf16.mxu0 0
    %154 = vmatpush1.bf16.xpose.msra.mxu0 0
    %155 = vmatprep.mubr.bf16.mxu0 %v76
    %156 = vmatmul.mubr.bf16.gmra.mrb[0].mxu0 %v75
    %v157 = vpop.f32.mrb[0].mxu0
    %v158 = vadd.f32 %v88, %v157
    %v159 = vpop.f32.mrb[0].mxu0
    %v160 = vpop.f32.mrb[0].mxu0
    %v161 = vpop.f32.mrb[0].mxu0
    %162 = vdwg.mxu0
    %163 = vmatprep.subr.bf16.mxu0 %v108
    %164 = vmatpush1.bf16.xpose.msra.mxu0 %v106
    %165 = vmatprep.subr.bf16.mxu0 0
    %166 = vmatpush1.bf16.xpose.msra.mxu0 0
    %167 = vmatprep.subr.bf16.mxu0 0
    %168 = vmatpush1.bf16.xpose.msra.mxu0 0
    %169 = vmatprep.subr.bf16.mxu0 0
    %170 = vmatpush1.bf16.xpose.msra.mxu0 0
    %171 = vmatprep.subr.bf16.mxu0 0
    %172 = vmatpush1.bf16.xpose.msra.mxu0 0
    %173 = vmatprep.subr.bf16.mxu0 0
    %174 = vmatpush1.bf16.xpose.msra.mxu0 0
    %175 = vmatprep.subr.bf16.mxu0 0
    %176 = vmatpush1.bf16.xpose.msra.mxu0 0
    %177 = vmatprep.subr.bf16.mxu0 0
    %178 = vmatpush1.bf16.xpose.msra.mxu0 0
    %179 = vmatprep.subr.bf16.mxu0 0
    %180 = vmatpush1.bf16.xpose.msra.mxu0 0
    %181 = vmatprep.subr.bf16.mxu0 0
    %182 = vmatpush1.bf16.xpose.msra.mxu0 0
    %183 = vmatprep.subr.bf16.mxu0 0
    %184 = vmatpush1.bf16.xpose.msra.mxu0 0
    %185 = vmatprep.subr.bf16.mxu0 0
    %186 = vmatpush1.bf16.xpose.msra.mxu0 0
    %187 = vmatprep.subr.bf16.mxu0 0
    %188 = vmatpush1.bf16.xpose.msra.mxu0 0
    %189 = vmatprep.subr.bf16.mxu0 0
    %190 = vmatpush1.bf16.xpose.msra.mxu0 0
    %191 = vmatprep.subr.bf16.mxu0 0
    %192 = vmatpush1.bf16.xpose.msra.mxu0 0
    %193 = vmatprep.subr.bf16.mxu0 0
    %194 = vmatpush1.bf16.xpose.msra.mxu0 0
    %195 = vmatprep.mubr.bf16.mxu0 %v78
    %196 = vmatmul.mubr.bf16.gmra.mrb[0].mxu0 %v77
    %v197 = vpop.f32.mrb[0].mxu0
    %v198 = vadd.f32 %v158, %v197
    %v199 = vpop.f32.mrb[0].mxu0
    %v200 = vpop.f32.mrb[0].mxu0
    %v201 = vpop.f32.mrb[0].mxu0
    %202 = vdwg.mxu0
    %203 = vmatprep.subr.bf16.mxu0 %v116
    %204 = vmatpush1.bf16.xpose.msra.mxu0 %v115
    %205 = vmatprep.subr.bf16.mxu0 0
    %206 = vmatpush1.bf16.xpose.msra.mxu0 0
    %207 = vmatprep.subr.bf16.mxu0 0
    %208 = vmatpush1.bf16.xpose.msra.mxu0 0
    %209 = vmatprep.subr.bf16.mxu0 0
    %210 = vmatpush1.bf16.xpose.msra.mxu0 0
    %211 = vmatprep.subr.bf16.mxu0 0
    %212 = vmatpush1.bf16.xpose.msra.mxu0 0
    %213 = vmatprep.subr.bf16.mxu0 0
    %214 = vmatpush1.bf16.xpose.msra.mxu0 0
    %215 = vmatprep.subr.bf16.mxu0 0
    %216 = vmatpush1.bf16.xpose.msra.mxu0 0
    %217 = vmatprep.subr.bf16.mxu0 0
    %218 = vmatpush1.bf16.xpose.msra.mxu0 0
    %219 = vmatprep.subr.bf16.mxu0 0
    %220 = vmatpush1.bf16.xpose.msra.mxu0 0
    %221 = vmatprep.subr.bf16.mxu0 0
    %222 = vmatpush1.bf16.xpose.msra.mxu0 0
    %223 = vmatprep.subr.bf16.mxu0 0
    %224 = vmatpush1.bf16.xpose.msra.mxu0 0
    %225 = vmatprep.subr.bf16.mxu0 0
    %226 = vmatpush1.bf16.xpose.msra.mxu0 0
    %227 = vmatprep.subr.bf16.mxu0 0
    %228 = vmatpush1.bf16.xpose.msra.mxu0 0
    %229 = vmatprep.subr.bf16.mxu0 0
    %230 = vmatpush1.bf16.xpose.msra.mxu0 0
    %231 = vmatprep.subr.bf16.mxu0 0
    %232 = vmatpush1.bf16.xpose.msra.mxu0 0
    %233 = vmatprep.subr.bf16.mxu0 0
    %234 = vmatpush1.bf16.xpose.msra.mxu0 0
    %235 = vmatprep.mubr.bf16.mxu0 %v80
    %236 = vmatmul.mubr.bf16.gmra.mrb[0].mxu0 %v79
    %v237 = vpop.f32.mrb[0].mxu0
    %v238 = vadd.f32 %v198, %v237
    %v239 = vpop.f32.mrb[0].mxu0
    %v240 = vpop.f32.mrb[0].mxu0
    %v241 = vpop.f32.mrb[0].mxu0
    %242 = vdwg.mxu0
    %v243 = vxor.u32 %v238, 2147483648
    %v244 = vmul.f32 %v243, 1.442695
    %v245 = vpow.pop %v244
    %v246 = vadd.f32 %v245, 1.0
    %v247 = vrcp.pop %v246
    %v248 = vmul.f32 1.0, %v247
    %vm249 = vcmask 17408
    %250 = vst.msk [vmem:[#allocation7] sm:$0x3] %vm249, %v248
    // Predicated region
    $region22: #{tpu_custom_call.1} parent=1 // pred_check
      _
    $region23: #{tpu_custom_call.1} parent=1 // pred_check_branch
      %252 = sbr.rel (0) target = $region25
    $region24: #{tpu_custom_call.1} parent=1 // pred_region
      %s254 = ssub.s32 32, 32
      %255 = vsyncadd [#allocation4], %s254
      %s257 = sshll.u32 [#allocation7], 4
      %s258 = int_to_ptr.vmem [resolvable:$true] %s257
      %260 = dma.vmem_to_hbm [thread:$0]  %s258, 32, %s3, [#allocation4]
    $region25: #{tpu_custom_call.1} parent=1 // pred_fallthru
      _
    // Predicated region
    $region26: #{tpu_custom_call.1} parent=1 // pred_check
      _
    $region27: #{tpu_custom_call.1} parent=1 // pred_check_branch
      %262 = sbr.rel (0) target = $region29
    $region28: #{tpu_custom_call.1} parent=1 // pred_region
      %263 = dma.done [#allocation4], 32
    $region29: #{tpu_custom_call.1} parent=1 // pred_fallthru
      _
    %264 = vsyncpa [#allocation3], 1
    %265 = vsyncpa [#allocation6], 1
    %266 = vsyncpa [#allocation4], 1

</llo_original>
